<compile_context>
chip_gen: v5e
topology: v5e:2x2
jax: 0.10.0
libtpu: 0.0.40
codegen_flags: <defaults>
</compile_context>

<pallas_src>
import functools

import jax
import jax.numpy as jnp
from jax import lax
from jax.experimental import pallas as pl
from jax.experimental.pallas import tpu as pltpu


def _directau_kernel(row_ids_ref, col_ids_ref,
                     u_row_ref, v_row_ref, u_col_ref, v_col_ref,
                     align_ref, unif_ref,
                     align_acc, su_acc, sv_acc, *, batch, t):
    p = pl.program_id(0)
    bi = row_ids_ref[p]
    bj = col_ids_ref[p]

    @pl.when(p == 0)
    def _init():
        align_acc[...] = jnp.zeros_like(align_acc)
        su_acc[...] = jnp.zeros_like(su_acc)
        sv_acc[...] = jnp.zeros_like(sv_acc)

    # F.normalize(x, dim=-1) = x / max(||x||, 1e-12) = x * rsqrt(max(||x||^2, 1e-24))
    def l2norm(ref):
        x = ref[...].astype(jnp.float32)
        ss = jnp.sum(x * x, axis=-1, keepdims=True)
        return x * lax.rsqrt(jnp.maximum(ss, 1e-24))

    u_r = l2norm(u_row_ref)
    v_r = l2norm(v_row_ref)
    u_c = l2norm(u_col_ref)
    v_c = l2norm(v_col_ref)

    # Uniformity: gram of this (row, col) block pair, fused for u and v.
    # NT contraction (dim 1 x dim 1) feeds the MXU directly — no transpose.
    dn = (((1,), (1,)), ((), ()))
    g_u = lax.dot_general(u_r, u_c, dn, preferred_element_type=jnp.float32)
    g_v = lax.dot_general(v_r, v_c, dn, preferred_element_type=jnp.float32)
    # Rows are unit-norm -> d_ij^2 = 2 - 2*<x_i, x_j>; clamp for fp noise.
    d2_u = jnp.maximum(2.0 - 2.0 * g_u, 0.0)
    d2_v = jnp.maximum(2.0 - 2.0 * g_v, 0.0)
    ex_u = jnp.exp(-t * d2_u)
    ex_v = jnp.exp(-t * d2_v)

    @pl.when(bi == bj)
    def _diag_pair():
        # Alignment: each row block appears exactly once as a diagonal pair.
        diff = u_r - v_r
        align_acc[...] += jnp.sum(diff * diff)
        # Strict upper triangle inside the block (local mask, O(TB^2) only on
        # the n_blk diagonal pairs; result is exact, independent of g_ii).
        r = lax.broadcasted_iota(jnp.int32, ex_u.shape, 0)
        c = lax.broadcasted_iota(jnp.int32, ex_u.shape, 1)
        upper = r < c
        su_acc[...] += jnp.sum(jnp.where(upper, ex_u, 0.0))
        sv_acc[...] += jnp.sum(jnp.where(upper, ex_v, 0.0))

    @pl.when(bi != bj)
    def _off_pair():
        # bj > bi by construction: every pair here is globally strict-upper.
        su_acc[...] += jnp.sum(ex_u)
        sv_acc[...] += jnp.sum(ex_v)

    @pl.when(p == pl.num_programs(0) - 1)
    def _finalize():
        n = jnp.float32(batch)
        n_pairs = jnp.float32(batch * (batch - 1) / 2.0)
        align_ref[...] = align_acc[...] / n
        unif_ref[...] = 0.5 * (jnp.log(su_acc[...] / n_pairs)
                               + jnp.log(sv_acc[...] / n_pairs))


def _pick_block(b, cap):
    """Largest block <= cap that tiles b exactly (multiple of 8), else b."""
    if b <= cap:
        return b
    for tb in range(cap - cap % 8, 7, -8):
        if b % tb == 0:
            return tb
    return b


def directau_forward(users_emb, items_emb, *, t=2.0, block_cap=512):
    """users_emb, items_emb: (B, D) float32 gathered embeddings."""
    B, D = users_emb.shape
    tb = _pick_block(B, block_cap)
    n_blk = B // tb

    # Enumerate only upper-triangle block pairs (bj >= bi): halves the O(B^2)
    # gram/exp work vs. a full (n_blk x n_blk) grid.  Row-major order keeps the
    # row block index constant across consecutive steps (Pallas skips the
    # re-DMA when the block index does not change).
    pairs = [(i, j) for i in range(n_blk) for j in range(i, n_blk)]
    row_ids = jnp.asarray([ij[0] for ij in pairs], dtype=jnp.int32)
    col_ids = jnp.asarray([ij[1] for ij in pairs], dtype=jnp.int32)
    n_pairs_grid = len(pairs)

    # index_maps receive (grid idx, *scalar-prefetch refs).
    row_spec = pl.BlockSpec((tb, D), lambda p, ri, ci: (ri[p], 0))
    col_spec = pl.BlockSpec((tb, D), lambda p, ri, ci: (ci[p], 0))
    scalar_spec = pl.BlockSpec((1, 1), lambda p, ri, ci: (0, 0))

    kernel = functools.partial(_directau_kernel, batch=B, t=float(t))
    align, unif = pl.pallas_call(
        kernel,
        out_shape=(jax.ShapeDtypeStruct((1, 1), jnp.float32),
                   jax.ShapeDtypeStruct((1, 1), jnp.float32)),
        grid_spec=pltpu.PrefetchScalarGridSpec(
            num_scalar_prefetch=2,
            grid=(n_pairs_grid,),
            in_specs=[row_spec, row_spec, col_spec, col_spec],
            out_specs=[scalar_spec, scalar_spec],
            scratch_shapes=[pltpu.VMEM((1, 1), jnp.float32)] * 3,
        ),
        # Single grid axis accumulating into scalar outputs -> "arbitrary".
        # TODO(synk): on v7x (2 TCs) split the pair list across cores with
        # per-core partial accumulators and a final combine for ~2x.
        compiler_params=pltpu.CompilerParams(
            dimension_semantics=("arbitrary",)),
    )(row_ids, col_ids, users_emb, items_emb, users_emb, items_emb)
    return align[0, 0], unif[0, 0]


def directau_apply(user_table, item_table, users, items):
    # Embedding lookup is glue (plain JAX gather); the losses run in the kernel.
    users_emb = jnp.take(user_table, users, axis=0)
    items_emb = jnp.take(item_table, items, axis=0)
    return directau_forward(users_emb, items_emb)


def _directau_ref(users_emb, items_emb, t=2.0):
    """Pure-JAX reference mirroring the PyTorch module (sanity check)."""
    def norm(x):
        return x / jnp.maximum(
            jnp.sqrt(jnp.sum(x * x, axis=-1, keepdims=True)), 1e-12)

    u = norm(users_emb)
    v = norm(items_emb)
    align = jnp.mean(jnp.sum((u - v) ** 2, axis=-1))

    def lunif(x):
        b = x.shape[0]
        d2 = jnp.sum((x[:, None, :] - x[None, :, :]) ** 2, axis=-1)
        mask = jnp.triu(jnp.ones((b, b), dtype=bool), k=1)
        return jnp.log(jnp.sum(jnp.where(mask, jnp.exp(-t * d2), 0.0))
                       / (b * (b - 1) / 2.0))

    return align, 0.5 * (lunif(u) + lunif(v))


if __name__ == "__main__":
    key = jax.random.PRNGKey(0)
    k_u, k_i, k_uid, k_iid = jax.random.split(key, 4)

    num_user, num_item = 50, 40
    embedding_size = 32
    batch = 8

    # nn.init.normal_(weight, 0, 0.01)
    user_table = 0.01 * jax.random.normal(k_u, (num_user, embedding_size),
                                          dtype=jnp.float32)
    item_table = 0.01 * jax.random.normal(k_i, (num_item, embedding_size),
                                          dtype=jnp.float32)

    users = jax.random.randint(k_uid, (batch,), 0, num_user, dtype=jnp.int32)
    items = jax.random.randint(k_iid, (batch,), 0, num_item, dtype=jnp.int32)

    # --- Test 1: single-block path (B=8 fits in one block) ---
    align_loss, unif_loss = jax.jit(directau_apply)(user_table, item_table,
                                                    users, items)
    jax.block_until_ready((align_loss, unif_loss))

    ref_align, ref_unif = _directau_ref(jnp.take(user_table, users, axis=0),
                                        jnp.take(item_table, items, axis=0))
    assert abs(float(align_loss) - float(ref_align)) < 2e-2, (align_loss, ref_align)
    assert abs(float(unif_loss) - float(ref_unif)) < 2e-2, (unif_loss, ref_unif)

    # --- Test 2: multi-block pair-enumeration path (B=16, block=8 -> 3 pairs) ---
    batch2 = 16
    k_uid2, k_iid2 = jax.random.split(jax.random.PRNGKey(1))
    users2 = jax.random.randint(k_uid2, (batch2,), 0, num_user, dtype=jnp.int32)
    items2 = jax.random.randint(k_iid2, (batch2,), 0, num_item, dtype=jnp.int32)
    u_emb2 = jnp.take(user_table, users2, axis=0)
    i_emb2 = jnp.take(item_table, items2, axis=0)

    blocked_fwd = jax.jit(functools.partial(directau_forward, block_cap=8))
    align2, unif2 = blocked_fwd(u_emb2, i_emb2)
    jax.block_until_ready((align2, unif2))

    ref_align2, ref_unif2 = _directau_ref(u_emb2, i_emb2)
    assert abs(float(align2) - float(ref_align2)) < 2e-2, (align2, ref_align2)
    assert abs(float(unif2) - float(ref_unif2)) < 2e-2, (unif2, ref_unif2)

    print("KERNEL_OK")
</pallas_src>

<mosaic_0001>
module attributes {stable_mosaic.version = 11 : i64} {
  func.func @_directau_kernel(%arg0: i32, %arg1: memref<1xi32, #tpu.memory_space<smem>>, %arg2: memref<1xi32, #tpu.memory_space<smem>>, %arg3: memref<8x32xf32, #tpu.memory_space<vmem>>, %arg4: memref<8x32xf32, #tpu.memory_space<vmem>>, %arg5: memref<8x32xf32, #tpu.memory_space<vmem>>, %arg6: memref<8x32xf32, #tpu.memory_space<vmem>>, %arg7: memref<1x1xf32, #tpu.memory_space<vmem>>, %arg8: memref<1x1xf32, #tpu.memory_space<vmem>>, %arg9: memref<1x1xf32, #tpu.memory_space<vmem>>, %arg10: memref<1x1xf32, #tpu.memory_space<vmem>>, %arg11: memref<1x1xf32, #tpu.memory_space<vmem>>) attributes {dimension_semantics = [#tpu.dimension_semantics<arbitrary>], iteration_bounds = array<i64: 1>, scalar_prefetch = 2 : i64, scratch_operands = 3 : i64, tpu.core_type = #tpu.core_type<tc>, window_params = [{transform_indices = @transform_0, window_bounds = array<i64: 8, 32>}, {transform_indices = @transform_1, window_bounds = array<i64: 8, 32>}, {transform_indices = @transform_2, window_bounds = array<i64: 8, 32>}, {transform_indices = @transform_3, window_bounds = array<i64: 8, 32>}, {pipeline_mode = #tpu.pipeline_mode<synchronous>, transform_indices = @transform_4, window_bounds = array<i64: 1, 1>}, {pipeline_mode = #tpu.pipeline_mode<synchronous>, transform_indices = @transform_5, window_bounds = array<i64: 1, 1>}]} {
    %0 = arith.index_cast %arg0 : i32 to index
    %1 = memref.load %arg1[%0] : memref<1xi32, #tpu.memory_space<smem>>
    %2 = arith.index_cast %arg0 : i32 to index
    %3 = memref.load %arg2[%2] : memref<1xi32, #tpu.memory_space<smem>>
    %c0_i32 = arith.constant 0 : i32
    %4 = arith.cmpi eq, %arg0, %c0_i32 : i32
    %5 = arith.extui %4 : i1 to i32
    %c0_i32_0 = arith.constant 0 : i32
    %6 = arith.cmpi ne, %5, %c0_i32_0 : i32
    scf.if %6 {
      %cst_29 = arith.constant 0.000000e+00 : f32
      %72 = vector.broadcast %cst_29 : f32 to vector<1x1xf32>
      %c0_30 = arith.constant 0 : index
      %c0_31 = arith.constant 0 : index
      %73 = vector.load %arg9[%c0_30, %c0_31] : memref<1x1xf32, #tpu.memory_space<vmem>>, vector<1x1xf32>
      tpu.vector_store %arg9[%c0_30, %c0_31], %72 {strides = array<i32>} : memref<1x1xf32, #tpu.memory_space<vmem>>, vector<1x1xf32>,
      %cst_32 = arith.constant 0.000000e+00 : f32
      %74 = vector.broadcast %cst_32 : f32 to vector<1x1xf32>
      %c0_33 = arith.constant 0 : index
      %c0_34 = arith.constant 0 : index
      %75 = vector.load %arg10[%c0_33, %c0_34] : memref<1x1xf32, #tpu.memory_space<vmem>>, vector<1x1xf32>
      tpu.vector_store %arg10[%c0_33, %c0_34], %74 {strides = array<i32>} : memref<1x1xf32, #tpu.memory_space<vmem>>, vector<1x1xf32>,
      %cst_35 = arith.constant 0.000000e+00 : f32
      %76 = vector.broadcast %cst_35 : f32 to vector<1x1xf32>
      %c0_36 = arith.constant 0 : index
      %c0_37 = arith.constant 0 : index
      %77 = vector.load %arg11[%c0_36, %c0_37] : memref<1x1xf32, #tpu.memory_space<vmem>>, vector<1x1xf32>
      tpu.vector_store %arg11[%c0_36, %c0_37], %76 {strides = array<i32>} : memref<1x1xf32, #tpu.memory_space<vmem>>, vector<1x1xf32>,
    } else {
    }
    %c0 = arith.constant 0 : index
    %c0_1 = arith.constant 0 : index
    %7 = vector.load %arg3[%c0, %c0_1] : memref<8x32xf32, #tpu.memory_space<vmem>>, vector<8x32xf32>
    %8 = arith.mulf %7, %7 : vector<8x32xf32>
    %cst = arith.constant dense<0.000000e+00> : vector<8xf32>
    %9 = vector.multi_reduction <add>, %8, %cst [1] : vector<8x32xf32> to vector<8xf32>
    %10 = vector.shape_cast %9 : vector<8xf32> to vector<8x1xf32>
    %cst_2 = arith.constant 1.000000e-24 : f32
    %11 = vector.broadcast %cst_2 : f32 to vector<8x1xf32>
    %12 = arith.maximumf %10, %11 : vector<8x1xf32>
    %13 = math.rsqrt %12 : vector<8x1xf32>
    %14 = vector.broadcast %13 : vector<8x1xf32> to vector<8x32xf32>
    %15 = arith.mulf %7, %14 : vector<8x32xf32>
    %c0_3 = arith.constant 0 : index
    %c0_4 = arith.constant 0 : index
    %16 = vector.load %arg4[%c0_3, %c0_4] : memref<8x32xf32, #tpu.memory_space<vmem>>, vector<8x32xf32>
    %17 = arith.mulf %16, %16 : vector<8x32xf32>
    %cst_5 = arith.constant dense<0.000000e+00> : vector<8xf32>
    %18 = vector.multi_reduction <add>, %17, %cst_5 [1] : vector<8x32xf32> to vector<8xf32>
    %19 = vector.shape_cast %18 : vector<8xf32> to vector<8x1xf32>
    %cst_6 = arith.constant 1.000000e-24 : f32
    %20 = vector.broadcast %cst_6 : f32 to vector<8x1xf32>
    %21 = arith.maximumf %19, %20 : vector<8x1xf32>
    %22 = math.rsqrt %21 : vector<8x1xf32>
    %23 = vector.broadcast %22 : vector<8x1xf32> to vector<8x32xf32>
    %24 = arith.mulf %16, %23 : vector<8x32xf32>
    %c0_7 = arith.constant 0 : index
    %c0_8 = arith.constant 0 : index
    %25 = vector.load %arg5[%c0_7, %c0_8] : memref<8x32xf32, #tpu.memory_space<vmem>>, vector<8x32xf32>
    %26 = arith.mulf %25, %25 : vector<8x32xf32>
    %cst_9 = arith.constant dense<0.000000e+00> : vector<8xf32>
    %27 = vector.multi_reduction <add>, %26, %cst_9 [1] : vector<8x32xf32> to vector<8xf32>
    %28 = vector.shape_cast %27 : vector<8xf32> to vector<8x1xf32>
    %cst_10 = arith.constant 1.000000e-24 : f32
    %29 = vector.broadcast %cst_10 : f32 to vector<8x1xf32>
    %30 = arith.maximumf %28, %29 : vector<8x1xf32>
    %31 = math.rsqrt %30 : vector<8x1xf32>
    %32 = vector.broadcast %31 : vector<8x1xf32> to vector<8x32xf32>
    %33 = arith.mulf %25, %32 : vector<8x32xf32>
    %c0_11 = arith.constant 0 : index
    %c0_12 = arith.constant 0 : index
    %34 = vector.load %arg6[%c0_11, %c0_12] : memref<8x32xf32, #tpu.memory_space<vmem>>, vector<8x32xf32>
    %35 = arith.mulf %34, %34 : vector<8x32xf32>
    %cst_13 = arith.constant dense<0.000000e+00> : vector<8xf32>
    %36 = vector.multi_reduction <add>, %35, %cst_13 [1] : vector<8x32xf32> to vector<8xf32>
    %37 = vector.shape_cast %36 : vector<8xf32> to vector<8x1xf32>
    %cst_14 = arith.constant 1.000000e-24 : f32
    %38 = vector.broadcast %cst_14 : f32 to vector<8x1xf32>
    %39 = arith.maximumf %37, %38 : vector<8x1xf32>
    %40 = math.rsqrt %39 : vector<8x1xf32>
    %41 = vector.broadcast %40 : vector<8x1xf32> to vector<8x32xf32>
    %42 = arith.mulf %34, %41 : vector<8x32xf32>
    %cst_15 = arith.constant dense<0.000000e+00> : vector<8x8xf32>
    %43 = tpu.matmul %15, %33, %cst_15 {dimension_numbers = #tpu.dot_dimension_numbers<[1], [1], [0], [0], [0, 0, 1, 0], [], []>} : vector<8x32xf32>, vector<8x32xf32>, vector<8x8xf32> -> vector<8x8xf32>
    %cst_16 = arith.constant dense<0.000000e+00> : vector<8x8xf32>
    %44 = tpu.matmul %24, %42, %cst_16 {dimension_numbers = #tpu.dot_dimension_numbers<[1], [1], [0], [0], [0, 0, 1, 0], [], []>} : vector<8x32xf32>, vector<8x32xf32>, vector<8x8xf32> -> vector<8x8xf32>
    %cst_17 = arith.constant 2.000000e+00 : f32
    %45 = vector.broadcast %cst_17 : f32 to vector<8x8xf32>
    %46 = arith.mulf %45, %43 : vector<8x8xf32>
    %cst_18 = arith.constant 2.000000e+00 : f32
    %47 = vector.broadcast %cst_18 : f32 to vector<8x8xf32>
    %48 = arith.subf %47, %46 : vector<8x8xf32>
    %cst_19 = arith.constant 0.000000e+00 : f32
    %49 = vector.broadcast %cst_19 : f32 to vector<8x8xf32>
    %50 = arith.maximumf %48, %49 : vector<8x8xf32>
    %cst_20 = arith.constant 2.000000e+00 : f32
    %51 = vector.broadcast %cst_20 : f32 to vector<8x8xf32>
    %52 = arith.mulf %51, %44 : vector<8x8xf32>
    %cst_21 = arith.constant 2.000000e+00 : f32
    %53 = vector.broadcast %cst_21 : f32 to vector<8x8xf32>
    %54 = arith.subf %53, %52 : vector<8x8xf32>
    %cst_22 = arith.constant 0.000000e+00 : f32
    %55 = vector.broadcast %cst_22 : f32 to vector<8x8xf32>
    %56 = arith.maximumf %54, %55 : vector<8x8xf32>
    %cst_23 = arith.constant -2.000000e+00 : f32
    %57 = vector.broadcast %cst_23 : f32 to vector<8x8xf32>
    %58 = arith.mulf %57, %50 : vector<8x8xf32>
    %59 = math.exp %58 : vector<8x8xf32>
    %cst_24 = arith.constant -2.000000e+00 : f32
    %60 = vector.broadcast %cst_24 : f32 to vector<8x8xf32>
    %61 = arith.mulf %60, %56 : vector<8x8xf32>
    %62 = math.exp %61 : vector<8x8xf32>
    %63 = arith.cmpi eq, %1, %3 : i32
    %64 = arith.extui %63 : i1 to i32
    %c0_i32_25 = arith.constant 0 : i32
    %65 = arith.cmpi ne, %64, %c0_i32_25 : i32
    scf.if %65 {
      %72 = arith.subf %15, %24 : vector<8x32xf32>
      %c0_29 = arith.constant 0 : index
      %c0_30 = arith.constant 0 : index
      %73 = vector.load %arg9[%c0_29, %c0_30] : memref<1x1xf32, #tpu.memory_space<vmem>>, vector<1x1xf32>
      %74 = arith.mulf %72, %72 : vector<8x32xf32>
      %75 = vector.shape_cast %74 : vector<8x32xf32> to vector<1x8x32xf32>
      %cst_31 = arith.constant dense<0.000000e+00> : vector<1xf32>
      %76 = vector.multi_reduction <add>, %75, %cst_31 [1, 2] : vector<1x8x32xf32> to vector<1xf32>
      %77 = vector.shape_cast %76 : vector<1xf32> to vector<1x1x1xf32>
      %78 = vector.extract %77[0, 0, 0] : f32 from vector<1x1x1xf32>
      %79 = vector.broadcast %78 : f32 to vector<1x1xf32>
      %80 = arith.addf %73, %79 : vector<1x1xf32>
      %c0_32 = arith.constant 0 : index
      %c0_33 = arith.constant 0 : index
      %81 = vector.load %arg9[%c0_32, %c0_33] : memref<1x1xf32, #tpu.memory_space<vmem>>, vector<1x1xf32>
      tpu.vector_store %arg9[%c0_32, %c0_33], %80 {strides = array<i32>} : memref<1x1xf32, #tpu.memory_space<vmem>>, vector<1x1xf32>,
      %82 = tpu.iota {dimensions = array<i32: 0>} : vector<8x8xi32>
      %83 = tpu.iota {dimensions = array<i32: 1>} : vector<8x8xi32>
      %84 = arith.cmpi slt, %82, %83 : vector<8x8xi32>
      %c0_34 = arith.constant 0 : index
      %c0_35 = arith.constant 0 : index
      %85 = vector.load %arg10[%c0_34, %c0_35] : memref<1x1xf32, #tpu.memory_space<vmem>>, vector<1x1xf32>
      %cst_36 = arith.constant 0.000000e+00 : f32
      %86 = vector.broadcast %cst_36 : f32 to vector<8x8xf32>
      %87 = arith.select %84, %59, %86 : vector<8x8xi1>, vector<8x8xf32>
      %88 = vector.shape_cast %87 : vector<8x8xf32> to vector<1x8x8xf32>
      %cst_37 = arith.constant dense<0.000000e+00> : vector<1xf32>
      %89 = vector.multi_reduction <add>, %88, %cst_37 [1, 2] : vector<1x8x8xf32> to vector<1xf32>
      %90 = vector.shape_cast %89 : vector<1xf32> to vector<1x1x1xf32>
      %91 = vector.extract %90[0, 0, 0] : f32 from vector<1x1x1xf32>
      %92 = vector.broadcast %91 : f32 to vector<1x1xf32>
      %93 = arith.addf %85, %92 : vector<1x1xf32>
      %c0_38 = arith.constant 0 : index
      %c0_39 = arith.constant 0 : index
      %94 = vector.load %arg10[%c0_38, %c0_39] : memref<1x1xf32, #tpu.memory_space<vmem>>, vector<1x1xf32>
      tpu.vector_store %arg10[%c0_38, %c0_39], %93 {strides = array<i32>} : memref<1x1xf32, #tpu.memory_space<vmem>>, vector<1x1xf32>,
      %c0_40 = arith.constant 0 : index
      %c0_41 = arith.constant 0 : index
      %95 = vector.load %arg11[%c0_40, %c0_41] : memref<1x1xf32, #tpu.memory_space<vmem>>, vector<1x1xf32>
      %cst_42 = arith.constant 0.000000e+00 : f32
      %96 = vector.broadcast %cst_42 : f32 to vector<8x8xf32>
      %97 = arith.select %84, %62, %96 : vector<8x8xi1>, vector<8x8xf32>
      %98 = vector.shape_cast %97 : vector<8x8xf32> to vector<1x8x8xf32>
      %cst_43 = arith.constant dense<0.000000e+00> : vector<1xf32>
      %99 = vector.multi_reduction <add>, %98, %cst_43 [1, 2] : vector<1x8x8xf32> to vector<1xf32>
      %100 = vector.shape_cast %99 : vector<1xf32> to vector<1x1x1xf32>
      %101 = vector.extract %100[0, 0, 0] : f32 from vector<1x1x1xf32>
      %102 = vector.broadcast %101 : f32 to vector<1x1xf32>
      %103 = arith.addf %95, %102 : vector<1x1xf32>
      %c0_44 = arith.constant 0 : index
      %c0_45 = arith.constant 0 : index
      %104 = vector.load %arg11[%c0_44, %c0_45] : memref<1x1xf32, #tpu.memory_space<vmem>>, vector<1x1xf32>
      tpu.vector_store %arg11[%c0_44, %c0_45], %103 {strides = array<i32>} : memref<1x1xf32, #tpu.memory_space<vmem>>, vector<1x1xf32>,
    } else {
    }
    %66 = arith.cmpi ne, %1, %3 : i32
    %67 = arith.extui %66 : i1 to i32
    %c0_i32_26 = arith.constant 0 : i32
    %68 = arith.cmpi ne, %67, %c0_i32_26 : i32
    scf.if %68 {
      %c0_29 = arith.constant 0 : index
      %c0_30 = arith.constant 0 : index
      %72 = vector.load %arg10[%c0_29, %c0_30] : memref<1x1xf32, #tpu.memory_space<vmem>>, vector<1x1xf32>
      %73 = vector.shape_cast %59 : vector<8x8xf32> to vector<1x8x8xf32>
      %cst_31 = arith.constant dense<0.000000e+00> : vector<1xf32>
      %74 = vector.multi_reduction <add>, %73, %cst_31 [1, 2] : vector<1x8x8xf32> to vector<1xf32>
      %75 = vector.shape_cast %74 : vector<1xf32> to vector<1x1x1xf32>
      %76 = vector.extract %75[0, 0, 0] : f32 from vector<1x1x1xf32>
      %77 = vector.broadcast %76 : f32 to vector<1x1xf32>
      %78 = arith.addf %72, %77 : vector<1x1xf32>
      %c0_32 = arith.constant 0 : index
      %c0_33 = arith.constant 0 : index
      %79 = vector.load %arg10[%c0_32, %c0_33] : memref<1x1xf32, #tpu.memory_space<vmem>>, vector<1x1xf32>
      tpu.vector_store %arg10[%c0_32, %c0_33], %78 {strides = array<i32>} : memref<1x1xf32, #tpu.memory_space<vmem>>, vector<1x1xf32>,
      %c0_34 = arith.constant 0 : index
      %c0_35 = arith.constant 0 : index
      %80 = vector.load %arg11[%c0_34, %c0_35] : memref<1x1xf32, #tpu.memory_space<vmem>>, vector<1x1xf32>
      %81 = vector.shape_cast %62 : vector<8x8xf32> to vector<1x8x8xf32>
      %cst_36 = arith.constant dense<0.000000e+00> : vector<1xf32>
      %82 = vector.multi_reduction <add>, %81, %cst_36 [1, 2] : vector<1x8x8xf32> to vector<1xf32>
      %83 = vector.shape_cast %82 : vector<1xf32> to vector<1x1x1xf32>
      %84 = vector.extract %83[0, 0, 0] : f32 from vector<1x1x1xf32>
      %85 = vector.broadcast %84 : f32 to vector<1x1xf32>
      %86 = arith.addf %80, %85 : vector<1x1xf32>
      %c0_37 = arith.constant 0 : index
      %c0_38 = arith.constant 0 : index
      %87 = vector.load %arg11[%c0_37, %c0_38] : memref<1x1xf32, #tpu.memory_space<vmem>>, vector<1x1xf32>
      tpu.vector_store %arg11[%c0_37, %c0_38], %86 {strides = array<i32>} : memref<1x1xf32, #tpu.memory_space<vmem>>, vector<1x1xf32>,
    } else {
    }
    %c0_i32_27 = arith.constant 0 : i32
    %69 = arith.cmpi eq, %arg0, %c0_i32_27 : i32
    %70 = arith.extui %69 : i1 to i32
    %c0_i32_28 = arith.constant 0 : i32
    %71 = arith.cmpi ne, %70, %c0_i32_28 : i32
    scf.if %71 {
      %c0_29 = arith.constant 0 : index
      %c0_30 = arith.constant 0 : index
      %72 = vector.load %arg9[%c0_29, %c0_30] : memref<1x1xf32, #tpu.memory_space<vmem>>, vector<1x1xf32>
      %cst_31 = arith.constant 8.000000e+00 : f32
      %73 = vector.broadcast %cst_31 : f32 to vector<1x1xf32>
      %74 = arith.divf %72, %73 : vector<1x1xf32>
      %c0_32 = arith.constant 0 : index
      %c0_33 = arith.constant 0 : index
      %75 = vector.load %arg7[%c0_32, %c0_33] : memref<1x1xf32, #tpu.memory_space<vmem>>, vector<1x1xf32>
      tpu.vector_store %arg7[%c0_32, %c0_33], %74 {strides = array<i32>} : memref<1x1xf32, #tpu.memory_space<vmem>>, vector<1x1xf32>,
      %c0_34 = arith.constant 0 : index
      %c0_35 = arith.constant 0 : index
      %76 = vector.load %arg10[%c0_34, %c0_35] : memref<1x1xf32, #tpu.memory_space<vmem>>, vector<1x1xf32>
      %cst_36 = arith.constant 2.800000e+01 : f32
      %77 = vector.broadcast %cst_36 : f32 to vector<1x1xf32>
      %78 = arith.divf %76, %77 : vector<1x1xf32>
      %79 = math.log %78 : vector<1x1xf32>
      %c0_37 = arith.constant 0 : index
      %c0_38 = arith.constant 0 : index
      %80 = vector.load %arg11[%c0_37, %c0_38] : memref<1x1xf32, #tpu.memory_space<vmem>>, vector<1x1xf32>
      %cst_39 = arith.constant 2.800000e+01 : f32
      %81 = vector.broadcast %cst_39 : f32 to vector<1x1xf32>
      %82 = arith.divf %80, %81 : vector<1x1xf32>
      %83 = math.log %82 : vector<1x1xf32>
      %84 = arith.addf %79, %83 : vector<1x1xf32>
      %cst_40 = arith.constant 5.000000e-01 : f32
      %85 = vector.broadcast %cst_40 : f32 to vector<1x1xf32>
      %86 = arith.mulf %85, %84 : vector<1x1xf32>
      %c0_41 = arith.constant 0 : index
      %c0_42 = arith.constant 0 : index
      %87 = vector.load %arg8[%c0_41, %c0_42] : memref<1x1xf32, #tpu.memory_space<vmem>>, vector<1x1xf32>
      tpu.vector_store %arg8[%c0_41, %c0_42], %86 {strides = array<i32>} : memref<1x1xf32, #tpu.memory_space<vmem>>, vector<1x1xf32>,
    } else {
    }
    return
  }
  func.func @transform_0(%arg0: i32, %arg1: memref<1xi32, #tpu.memory_space<smem>>, %arg2: memref<1xi32, #tpu.memory_space<smem>>) -> (i32, i32) {
    %0 = arith.index_cast %arg0 : i32 to index
    %1 = memref.load %arg1[%0] : memref<1xi32, #tpu.memory_space<smem>>
    %c0_i32 = arith.constant 0 : i32
    %c0_i32_0 = arith.constant 0 : i32
    return %1, %c0_i32 : i32, i32
  }
  func.func @transform_1(%arg0: i32, %arg1: memref<1xi32, #tpu.memory_space<smem>>, %arg2: memref<1xi32, #tpu.memory_space<smem>>) -> (i32, i32) {
    %0 = arith.index_cast %arg0 : i32 to index
    %1 = memref.load %arg1[%0] : memref<1xi32, #tpu.memory_space<smem>>
    %c0_i32 = arith.constant 0 : i32
    %c0_i32_0 = arith.constant 0 : i32
    return %1, %c0_i32 : i32, i32
  }
  func.func @transform_2(%arg0: i32, %arg1: memref<1xi32, #tpu.memory_space<smem>>, %arg2: memref<1xi32, #tpu.memory_space<smem>>) -> (i32, i32) {
    %0 = arith.index_cast %arg0 : i32 to index
    %1 = memref.load %arg2[%0] : memref<1xi32, #tpu.memory_space<smem>>
    %c0_i32 = arith.constant 0 : i32
    %c0_i32_0 = arith.constant 0 : i32
    return %1, %c0_i32 : i32, i32
  }
  func.func @transform_3(%arg0: i32, %arg1: memref<1xi32, #tpu.memory_space<smem>>, %arg2: memref<1xi32, #tpu.memory_space<smem>>) -> (i32, i32) {
    %0 = arith.index_cast %arg0 : i32 to index
    %1 = memref.load %arg2[%0] : memref<1xi32, #tpu.memory_space<smem>>
    %c0_i32 = arith.constant 0 : i32
    %c0_i32_0 = arith.constant 0 : i32
    return %1, %c0_i32 : i32, i32
  }
  func.func @transform_4(%arg0: i32, %arg1: memref<1xi32, #tpu.memory_space<smem>>, %arg2: memref<1xi32, #tpu.memory_space<smem>>) -> (i32, i32) {
    %c0_i32 = arith.constant 0 : i32
    %c0_i32_0 = arith.constant 0 : i32
    %c0_i32_1 = arith.constant 0 : i32
    return %c0_i32, %c0_i32_0 : i32, i32
  }
  func.func @transform_5(%arg0: i32, %arg1: memref<1xi32, #tpu.memory_space<smem>>, %arg2: memref<1xi32, #tpu.memory_space<smem>>) -> (i32, i32) {
    %c0_i32 = arith.constant 0 : i32
    %c0_i32_0 = arith.constant 0 : i32
    %c0_i32_1 = arith.constant 0 : i32
    return %c0_i32, %c0_i32_0 : i32, i32
  }
}

</mosaic_0001>

<llo_original>
// kernel: directau_apply.1
$region0: #{directau_apply.1}
  #allocation0 [shape = 'u32[]', space=smem, size = 0x4, offset = 0x4, fixed_abs, tag = 'smem constant byte address 0x4 - core index']
  #allocation1 [shape = 'u32[72,128]{1,0:T(1,128)}', space=vmem, size = 0x9000, scoped, tag = 'internal scratch']
  #allocation2 [shape = 'f32[1,1]{1,0:T(1,128)}', space=vmem, size = 0x200, scoped, tag = 'scratch operand']
  #allocation3 [shape = 'f32[1,1]{1,0:T(1,128)}', space=vmem, size = 0x200, scoped, tag = 'scratch operand']
  #allocation4 [shape = 'f32[1,1]{1,0:T(1,128)}', space=vmem, size = 0x200, scoped, tag = 'scratch operand']
  #allocation5 [shape = 's32[1]{0}', space=sflag, size = 0x4, scoped, tag = 'scoped memory for directau_apply.1']
  #allocation6 [shape = 's32[1]{0:T(128)S(6)}', space=smem, size = 0x200, scoped, tag = 'prefetched SMEM operand 0']
  #allocation7 [shape = 's32[1]{0:T(128)S(6)}', space=smem, size = 0x200, scoped, tag = 'prefetched SMEM operand 1']
  %s0 = inlined_call_operand.<no memory space> [shape: s32[1], index: 0, kind: input, shape index: {}, may-alias: {0,1}]
  %s1 = inlined_call_operand.<no memory space> [shape: s32[1], index: 1, kind: input, shape index: {}, may-alias: {0,1}]
  %s2 = inlined_call_operand.vmem [shape: f32[8,32], index: 2, kind: input, shape index: {}, may-alias: {2,4}]
  %s3 = inlined_call_operand.vmem [shape: f32[8,32], index: 3, kind: input, shape index: {}, may-alias: {3,5}]
  %s4 = inlined_call_operand.vmem [shape: f32[8,32], index: 4, kind: input, shape index: {}, may-alias: {2,4}]
  %s5 = inlined_call_operand.vmem [shape: f32[8,32], index: 5, kind: input, shape index: {}, may-alias: {3,5}]
  %s6 = inlined_call_operand.hbm [shape: f32[1,1], index: 6, kind: output, shape index: {0}]
  %s7 = inlined_call_operand.hbm [shape: f32[1,1], index: 7, kind: output, shape index: {1}]
  %8 = xla_tuple %s6, %s7
  %s9 = sld [smem:[#allocation0]]
  $region50: #{directau_apply.1} parent=0
    _
  %s11 = ssub.s32 1, %s9
  %s12 = scalar_select 0, %s11, %s9
  %13 = sst [smem:[#allocation6]] %s0
  %14 = sst [smem:[#allocation7]] %s1
  $region1: #{directau_apply.1} parent=0
    #allocation8 [shape = 'u8[512]{0}', space=vmem, size = 0x400, scoped, tag = 'output window, operand 0, single buffered']
    #allocation9 [shape = 's32[1]{0}', space=sflag, size = 0x4, scoped, tag = 'scoped memory for directau_apply.1']
    #allocation10 [shape = 'u8[512]{0}', space=vmem, size = 0x400, scoped, tag = 'output window, operand 1, single buffered']
    #allocation11 [shape = 's32[1]{0}', space=sflag, size = 0x4, scoped, tag = 'scoped memory for directau_apply.1']
    %15 = vsyncpa [#allocation9], 0
    %16 = vsyncpa [#allocation11], 0
    // Predicated region
    $region2: #{directau_apply.1} parent=1 // pred_check
      _
    $region3: #{directau_apply.1} parent=1 // pred_check_branch
      %18 = sbr.rel (0) target = $region5
    $region4: #{directau_apply.1} parent=1 // pred_region
      %s19 = sld [smem:[#allocation6]]
      %p20 = scmp.lt.s32.totalorder %s19, 0
      %s21 = scalar_select %p20, %s19, 0
      %s22 = smul.addr %s21, 8
      %s23 = scalar_lea.vmem %s2, %s22
      %s24 = sld [smem:[#allocation6]]
    $region5: #{directau_apply.1} parent=1 // pred_fallthru
      _
    // Predicated region
    $region6: #{directau_apply.1} parent=1 // pred_check
      _
    $region7: #{directau_apply.1} parent=1 // pred_check_branch
      %26 = sbr.rel (0) target = $region9
    $region8: #{directau_apply.1} parent=1 // pred_region
      %s27 = sld [smem:[#allocation6]]
      %p28 = scmp.lt.s32.totalorder %s27, 0
      %s29 = scalar_select %p28, %s27, 0
      %s30 = smul.addr %s29, 8
      %s31 = scalar_lea.vmem %s3, %s30
      %s32 = sld [smem:[#allocation6]]
    $region9: #{directau_apply.1} parent=1 // pred_fallthru
      _
    // Predicated region
    $region10: #{directau_apply.1} parent=1 // pred_check
      _
    $region11: #{directau_apply.1} parent=1 // pred_check_branch
      %34 = sbr.rel (0) target = $region13
    $region12: #{directau_apply.1} parent=1 // pred_region
      %s35 = sld [smem:[#allocation7]]
      %p36 = scmp.lt.s32.totalorder %s35, 0
      %s37 = scalar_select %p36, %s35, 0
      %s38 = smul.addr %s37, 8
      %s39 = scalar_lea.vmem %s4, %s38
      %s40 = sld [smem:[#allocation7]]
    $region13: #{directau_apply.1} parent=1 // pred_fallthru
      _
    // Predicated region
    $region14: #{directau_apply.1} parent=1 // pred_check
      _
    $region15: #{directau_apply.1} parent=1 // pred_check_branch
      %42 = sbr.rel (0) target = $region17
    $region16: #{directau_apply.1} parent=1 // pred_region
      %s43 = sld [smem:[#allocation7]]
      %p44 = scmp.lt.s32.totalorder %s43, 0
      %s45 = scalar_select %p44, %s43, 0
      %s46 = smul.addr %s45, 8
      %s47 = scalar_lea.vmem %s5, %s46
      %s48 = sld [smem:[#allocation7]]
    $region17: #{directau_apply.1} parent=1 // pred_fallthru
      _
    %s49 = sld [smem:[#allocation6]]
    %p50 = scmp.lt.s32.totalorder %s49, 0
    %s51 = scalar_select %p50, %s49, 0
    %s52 = smul.addr %s51, 8
    %s53 = scalar_lea.vmem %s2, %s52
    %s54 = sld [smem:[#allocation6]]
    %p55 = scmp.lt.s32.totalorder %s54, 0
    %s56 = scalar_select %p55, %s54, 0
    %s57 = smul.addr %s56, 8
    %s58 = scalar_lea.vmem %s3, %s57
    %s59 = sld [smem:[#allocation7]]
    %p60 = scmp.lt.s32.totalorder %s59, 0
    %s61 = scalar_select %p60, %s59, 0
    %s62 = smul.addr %s61, 8
    %s63 = scalar_lea.vmem %s4, %s62
    %s64 = sld [smem:[#allocation7]]
    %p65 = scmp.lt.s32.totalorder %s64, 0
    %s66 = scalar_select %p65, %s64, 0
    %s67 = smul.addr %s66, 8
    %s68 = scalar_lea.vmem %s5, %s67
    %s69 = sld [smem:[#allocation6]]
    %p70 = scmp.lt.s32.totalorder %s69, 0
    %s71 = scalar_select %p70, %s69, 0
    %s72 = smul.addr %s71, 8
    %s73 = scalar_lea.vmem %s2, %s72
    %s74 = sld [smem:[#allocation6]]
    %s75 = sld [smem:[#allocation6]]
    %p76 = scmp.lt.s32.totalorder %s75, 0
    %s77 = scalar_select %p76, %s75, 0
    %s78 = smul.addr %s77, 8
    %s79 = scalar_lea.vmem %s3, %s78
    %s80 = sld [smem:[#allocation6]]
    %s81 = sld [smem:[#allocation7]]
    %p82 = scmp.lt.s32.totalorder %s81, 0
    %s83 = scalar_select %p82, %s81, 0
    %s84 = smul.addr %s83, 8
    %s85 = scalar_lea.vmem %s4, %s84
    %s86 = sld [smem:[#allocation7]]
    %s87 = sld [smem:[#allocation7]]
    %p88 = scmp.lt.s32.totalorder %s87, 0
    %s89 = scalar_select %p88, %s87, 0
    %s90 = smul.addr %s89, 8
    %s91 = scalar_lea.vmem %s5, %s90
    %s92 = sld [smem:[#allocation7]]
    %s93 = sld [smem:[#allocation6]]
    %s94 = sld [smem:[#allocation7]]
    %p95 = scmp.eq.s32.totalorder 0, 0
    // Predicated region
    $region18: #{directau_apply.1} parent=1 // pred_check
      %p96 = pneg %p95
    $region19: #{directau_apply.1} parent=1 // pred_check_branch
      %98 = sbr.rel (%p96) target = $region21
    $region20: #{directau_apply.1} parent=1 // pred_region
      %vm99 = vcmask 0
      %100 = vst.msk [vmem:[#allocation2] sm:$0x1] %vm99, 0.0
      %101 = vst.msk [vmem:[#allocation3] sm:$0x1] %vm99, 0.0
      %102 = vst.msk [vmem:[#allocation4] sm:$0x1] %vm99, 0.0
    $region21: #{directau_apply.1} parent=1 // pred_fallthru
      _
    %v103 = vld [vmem:[%s73] sm:$0xff]
    %v104 = vmul.f32 %v103, %v103
    %vm105 = vcmask 261120
    %v106 = vsel %vm105, %v104, 0.0
    %107 = vadd.xlane.f32.xlu0 %v106
    %v108 = vpop.xlane.xlu0 %107
    %v109 = vmax.f32 %v108, 1e-24
    %v110 = vrsqrt.pop %v109
    %v111 = vmul.f32 %v110, %v109
    %v112 = vmul.f32 %v111, %v110
    %v113 = vmul.f32 0.5, %v112
    %v114 = vsub.f32 1.5, %v113
    %v115 = vmul.f32 %v110, %v114
    %vm116 = vweird.f32 %v109
    %vm117 = vweird.f32 %v110
    %vm118 = vmor %vm116, %vm117
    %v119 = vsel %vm118, %v110, %v115
    %v120 = vmul.f32 %v103, %v119
    %v121 = vld [vmem:[%s79] sm:$0xff]
    %v122 = vmul.f32 %v121, %v121
    %v123 = vsel %vm105, %v122, 0.0
    %124 = vadd.xlane.f32.xlu0 %v123
    %v125 = vpop.xlane.xlu0 %124
    %v126 = vmax.f32 %v125, 1e-24
    %v127 = vrsqrt.pop %v126
    %v128 = vmul.f32 %v127, %v126
    %v129 = vmul.f32 %v128, %v127
    %v130 = vmul.f32 0.5, %v129
    %v131 = vsub.f32 1.5, %v130
    %v132 = vmul.f32 %v127, %v131
    %vm133 = vweird.f32 %v126
    %vm134 = vweird.f32 %v127
    %vm135 = vmor %vm133, %vm134
    %v136 = vsel %vm135, %v127, %v132
    %v137 = vmul.f32 %v121, %v136
    %v138 = vld [vmem:[%s85] sm:$0xff]
    %v139 = vmul.f32 %v138, %v138
    %v140 = vsel %vm105, %v139, 0.0
    %141 = vadd.xlane.f32.xlu0 %v140
    %v142 = vpop.xlane.xlu0 %141
    %v143 = vmax.f32 %v142, 1e-24
    %v144 = vrsqrt.pop %v143
    %v145 = vmul.f32 %v144, %v143
    %v146 = vmul.f32 %v145, %v144
    %v147 = vmul.f32 0.5, %v146
    %v148 = vsub.f32 1.5, %v147
    %v149 = vmul.f32 %v144, %v148
    %vm150 = vweird.f32 %v143
    %vm151 = vweird.f32 %v144
    %vm152 = vmor %vm150, %vm151
    %v153 = vsel %vm152, %v144, %v149
    %v154 = vmul.f32 %v138, %v153
    %v155 = vld [vmem:[%s91] sm:$0xff]
    %v156 = vmul.f32 %v155, %v155
    %v157 = vsel %vm105, %v156, 0.0
    %158 = vadd.xlane.f32.xlu0 %v157
    %v159 = vpop.xlane.xlu0 %158
    %v160 = vmax.f32 %v159, 1e-24
    %v161 = vrsqrt.pop %v160
    %v162 = vmul.f32 %v161, %v160
    %v163 = vmul.f32 %v162, %v161
    %v164 = vmul.f32 0.5, %v163
    %v165 = vsub.f32 1.5, %v164
    %v166 = vmul.f32 %v161, %v165
    %vm167 = vweird.f32 %v160
    %vm168 = vweird.f32 %v161
    %vm169 = vmor %vm167, %vm168
    %v170 = vsel %vm169, %v161, %v166
    %v171 = vmul.f32 %v155, %v170
    %v173 = vsel %vm105, %v120, 0
    %v176 = vsel %vm105, %v154, 0
    %178 = vmatpush.xpose.msra.mxu0 0.0
    %179 = vmatpush.xpose.msra.mxu0 0.0
    %180 = vmatpush.xpose.msra.mxu0 0.0
    %181 = vmatpush.xpose.msra.mxu0 0.0
    %182 = vmatpush.xpose.msra.mxu0 0.0
    %183 = vmatpush.xpose.msra.mxu0 0.0
    %184 = vmatpush.xpose.msra.mxu0 0.0
    %185 = vmatpush.xpose.msra.mxu0 0.0
    %186 = vmatpush.xpose.msra.mxu0 0.0
    %187 = vmatpush.xpose.msra.mxu0 0.0
    %188 = vmatpush.xpose.msra.mxu0 0.0
    %189 = vmatpush.xpose.msra.mxu0 0.0
    %190 = vmatpush.xpose.msra.mxu0 0.0
    %191 = vmatpush.xpose.msra.mxu0 0.0
    %192 = vmatpush.xpose.msra.mxu0 0.0
    %193 = vmatpush.xpose.msra.mxu0 %v176
    %194 = vmatmul.f32.gmra.mxu0 %v173
    %v195 = vpop.f32.mrf.mxu0
    %v196 = vadd.f32 0.0, %v195
    %197 = vdwg.mxu0
    %v199 = vsel %vm105, %v137, 0
    %v202 = vsel %vm105, %v171, 0
    %204 = vmatpush.xpose.msra.mxu0 0.0
    %205 = vmatpush.xpose.msra.mxu0 0.0
    %206 = vmatpush.xpose.msra.mxu0 0.0
    %207 = vmatpush.xpose.msra.mxu0 0.0
    %208 = vmatpush.xpose.msra.mxu0 0.0
    %209 = vmatpush.xpose.msra.mxu0 0.0
    %210 = vmatpush.xpose.msra.mxu0 0.0
    %211 = vmatpush.xpose.msra.mxu0 0.0
    %212 = vmatpush.xpose.msra.mxu0 0.0
    %213 = vmatpush.xpose.msra.mxu0 0.0
    %214 = vmatpush.xpose.msra.mxu0 0.0
    %215 = vmatpush.xpose.msra.mxu0 0.0
    %216 = vmatpush.xpose.msra.mxu0 0.0
    %217 = vmatpush.xpose.msra.mxu0 0.0
    %218 = vmatpush.xpose.msra.mxu0 0.0
    %219 = vmatpush.xpose.msra.mxu0 %v202
    %220 = vmatmul.f32.gmra.mxu0 %v199
    %v221 = vpop.f32.mrf.mxu0
    %v222 = vadd.f32 0.0, %v221
    %223 = vdwg.mxu0
    %v224 = vmul.f32 %v196, 2.0
    %v225 = vsub.f32 2.0, %v224
    %v226 = vmax.f32 %v225, 0.0
    %v227 = vmul.f32 %v222, 2.0
    %v228 = vsub.f32 2.0, %v227
    %v229 = vmax.f32 %v228, 0.0
    %v230 = vmul.f32 %v226, -2.0
    %v231 = vmul.f32 %v230, 1.442695
    %v232 = vpow.pop %v231
    %v233 = vmul.f32 %v229, -2.0
    %v234 = vmul.f32 %v233, 1.442695
    %v235 = vpow.pop %v234
    %p236 = scmp.eq.s32.totalorder %s93, %s94
    // Predicated region
    $region22: #{directau_apply.1} parent=1 // pred_check
      %p237 = pneg %p236
    $region23: #{directau_apply.1} parent=1 // pred_check_branch
      %239 = sbr.rel (%p237) target = $region25
    $region24: #{directau_apply.1} parent=1 // pred_region
      %v240 = vsub.f32 %v120, %v137
      %v241 = vld [vmem:[#allocation2] sm:$0x1]
      %v242 = vmul.f32 %v240, %v240
      %v243 = vsel %vm105, %v242, 0.0
      %244 = vadd.xlane.f32.xlu0 %v243
      %v245 = vpop.xlane.xlu0 %244
      %v246 = vrot.slane %v245, 4
      %v247 = vadd.f32 %v245, %v246
      %v248 = vrot.slane %v247, 2
      %v249 = vadd.f32 %v247, %v248
      %v250 = vrot.slane %v249, 1
      %v251 = vadd.f32 %v249, %v250
      %s252 = vtos %v251
      %v253 = vstv %s252
      %v254 = vadd.f32 %v241, %v253
      %vm255 = vcmask 0
      %256 = vst.msk [vmem:[#allocation2] sm:$0x1] %vm255, %v254
      %v257 = vlaneseq
      %v258 = vshrl.u32 %v257, 7
      %v259 = vlaneseq
      %v260 = vand.u32 %v259, 127
      %vm261 = vcmp.lt.s32.totalorder %v258, %v260
      %v262 = vld [vmem:[#allocation3] sm:$0x1]
      %v263 = vsel %vm261, %v232, 0.0
      %vm264 = vcmask 64512
      %v265 = vsel %vm264, %v263, 0.0
      %266 = vadd.xlane.f32.xlu0 %v265
      %v267 = vpop.xlane.xlu0 %266
      %v268 = vrot.slane %v267, 4
      %v269 = vadd.f32 %v267, %v268
      %v270 = vrot.slane %v269, 2
      %v271 = vadd.f32 %v269, %v270
      %v272 = vrot.slane %v271, 1
      %v273 = vadd.f32 %v271, %v272
      %s274 = vtos %v273
      %v275 = vstv %s274
      %v276 = vadd.f32 %v262, %v275
      %277 = vst.msk [vmem:[#allocation3] sm:$0x1] %vm255, %v276
      %v278 = vld [vmem:[#allocation4] sm:$0x1]
      %v279 = vsel %vm261, %v235, 0.0
      %v280 = vsel %vm264, %v279, 0.0
      %281 = vadd.xlane.f32.xlu0 %v280
      %v282 = vpop.xlane.xlu0 %281
      %v283 = vrot.slane %v282, 4
      %v284 = vadd.f32 %v282, %v283
      %v285 = vrot.slane %v284, 2
      %v286 = vadd.f32 %v284, %v285
      %v287 = vrot.slane %v286, 1
      %v288 = vadd.f32 %v286, %v287
      %s289 = vtos %v288
      %v290 = vstv %s289
      %v291 = vadd.f32 %v278, %v290
      %292 = vst.msk [vmem:[#allocation4] sm:$0x1] %vm255, %v291
    $region25: #{directau_apply.1} parent=1 // pred_fallthru
      _
    %p293 = scmp.ne.s32.totalorder %s93, %s94
    // Predicated region
    $region26: #{directau_apply.1} parent=1 // pred_check
      %p294 = pneg %p293
    $region27: #{directau_apply.1} parent=1 // pred_check_branch
      %296 = sbr.rel (%p294) target = $region29
    $region28: #{directau_apply.1} parent=1 // pred_region
      %v297 = vld [vmem:[#allocation3] sm:$0x1]
      %vm298 = vcmask 64512
      %v299 = vsel %vm298, %v232, 0.0
      %300 = vadd.xlane.f32.xlu0 %v299
      %v301 = vpop.xlane.xlu0 %300
      %v302 = vrot.slane %v301, 4
      %v303 = vadd.f32 %v301, %v302
      %v304 = vrot.slane %v303, 2
      %v305 = vadd.f32 %v303, %v304
      %v306 = vrot.slane %v305, 1
      %v307 = vadd.f32 %v305, %v306
      %s308 = vtos %v307
      %v309 = vstv %s308
      %v310 = vadd.f32 %v297, %v309
      %vm311 = vcmask 0
      %312 = vst.msk [vmem:[#allocation3] sm:$0x1] %vm311, %v310
      %v313 = vld [vmem:[#allocation4] sm:$0x1]
      %v314 = vsel %vm298, %v235, 0.0
      %315 = vadd.xlane.f32.xlu0 %v314
      %v316 = vpop.xlane.xlu0 %315
      %v317 = vrot.slane %v316, 4
      %v318 = vadd.f32 %v316, %v317
      %v319 = vrot.slane %v318, 2
      %v320 = vadd.f32 %v318, %v319
      %v321 = vrot.slane %v320, 1
      %v322 = vadd.f32 %v320, %v321
      %s323 = vtos %v322
      %v324 = vstv %s323
      %v325 = vadd.f32 %v313, %v324
      %326 = vst.msk [vmem:[#allocation4] sm:$0x1] %vm311, %v325
    $region29: #{directau_apply.1} parent=1 // pred_fallthru
      _
    // Predicated region
    $region30: #{directau_apply.1} parent=1 // pred_check
      %p327 = pneg %p95
    $region31: #{directau_apply.1} parent=1 // pred_check_branch
      %329 = sbr.rel (%p327) target = $region33
    $region32: #{directau_apply.1} parent=1 // pred_region
      %v330 = vld [vmem:[#allocation2] sm:$0x1]
      %v331 = vrcp.pop 8.0
      %v332 = vmul.f32 8.0, %v331
      %v333 = vsub.f32 1.0, %v332
      %v334 = vmul.f32 %v331, %v333
      %v335 = vadd.f32 %v331, %v334
      %vm336 = vweird.f32 %v331
      %v337 = vsel %vm336, %v331, %v335
      %v338 = vmul.f32 %v330, %v337
      %vm339 = vcmask 0
      %340 = vst.msk [vmem:[#allocation8] sm:$0x1] %vm339, %v338
      %v341 = vld [vmem:[#allocation3] sm:$0x1]
      %v342 = vrcp.pop 28.0
      %v343 = vmul.f32 28.0, %v342
      %v344 = vsub.f32 1.0, %v343
      %v345 = vmul.f32 %v342, %v344
      %v346 = vadd.f32 %v342, %v345
      %vm347 = vweird.f32 %v342
      %v348 = vsel %vm347, %v342, %v346
      %v349 = vmul.f32 %v341, %v348
      %v350 = vlog2.pop %v349
      %v351 = vmul.f32 %v350, 0.6931472
      %v352 = vld [vmem:[#allocation4] sm:$0x1]
      %v353 = vmul.f32 %v352, %v348
      %v354 = vlog2.pop %v353
      %v355 = vmul.f32 %v354, 0.6931472
      %v356 = vadd.f32 %v351, %v355
      %v357 = vmul.f32 %v356, 0.5
      %358 = vst.msk [vmem:[#allocation10] sm:$0x1] %vm339, %v357
    $region33: #{directau_apply.1} parent=1 // pred_fallthru
      _
    // Predicated region
    $region34: #{directau_apply.1} parent=1 // pred_check
      _
    $region35: #{directau_apply.1} parent=1 // pred_check_branch
      %360 = sbr.rel (0) target = $region37
    $region36: #{directau_apply.1} parent=1 // pred_region
      %362 = vsyncadd [#allocation9], 0
      %s364 = sshll.u32 [#allocation8], 4
      %s365 = int_to_ptr.vmem [resolvable:$true] %s364
      %s366 = sshll.u32 %s6, 4
      %s367 = int_to_ptr.hbm [resolvable:$true] %s366
      %369 = dma.vmem_to_hbm [thread:$0]  %s365, 16, %s367, [#allocation9]
    $region37: #{directau_apply.1} parent=1 // pred_fallthru
      _
    // Predicated region
    $region38: #{directau_apply.1} parent=1 // pred_check
      _
    $region39: #{directau_apply.1} parent=1 // pred_check_branch
      %371 = sbr.rel (0) target = $region41
    $region40: #{directau_apply.1} parent=1 // pred_region
      %373 = vsyncadd [#allocation11], 0
      %s375 = sshll.u32 [#allocation10], 4
      %s376 = int_to_ptr.vmem [resolvable:$true] %s375
      %s377 = sshll.u32 %s7, 4
      %s378 = int_to_ptr.hbm [resolvable:$true] %s377
      %380 = dma.vmem_to_hbm [thread:$0]  %s376, 16, %s378, [#allocation11]
    $region41: #{directau_apply.1} parent=1 // pred_fallthru
      _
    // Predicated region
    $region42: #{directau_apply.1} parent=1 // pred_check
      _
    $region43: #{directau_apply.1} parent=1 // pred_check_branch
      %382 = sbr.rel (0) target = $region45
    $region44: #{directau_apply.1} parent=1 // pred_region
      %384 = dma.done [#allocation9], 16
    $region45: #{directau_apply.1} parent=1 // pred_fallthru
      _
    // Predicated region
    $region46: #{directau_apply.1} parent=1 // pred_check
      _
    $region47: #{directau_apply.1} parent=1 // pred_check_branch
      %386 = sbr.rel (0) target = $region49
    $region48: #{directau_apply.1} parent=1 // pred_region
      %388 = dma.done [#allocation11], 16
    $region49: #{directau_apply.1} parent=1 // pred_fallthru
      _
    %389 = vsyncpa [#allocation9], 1
    %390 = vsyncpa [#allocation11], 1

</llo_original>
